<compile_context>
chip_gen: v7x
topology: tpu7x:2x2x1
jax: 0.10.0
libtpu: 0.0.40
codegen_flags: <defaults>
</compile_context>

<pallas_src>
import functools

import jax
import jax.numpy as jnp
import numpy as np
from jax.experimental import pallas as pl
from jax.experimental.pallas import tpu as pltpu


# --------------------------------------------------------------------------
# Kernel: one row-tile of the fused 4-layer MLP.
# --------------------------------------------------------------------------
def decoder_kernel(x_ref,            # (TILE_M, Dx)   bf16
                   w1_ref, b1_ref,   # (Dx, 128) bf16, (1, 128) f32  (b1 already has r@W1r folded in)
                   w2_ref, b2_ref,   # (128, 64) bf16, (1, 64)  f32
                   w3_ref, b3_ref,   # (64, 32)  bf16, (1, 32)  f32
                   w4_ref, b4_ref,   # (32, 4)   bf16, (1, 4)   f32
                   o_ref):           # (TILE_M, 4) f32
    x = x_ref[...]                                                      # bf16

    # Layer 1 (r-term already folded into b1): bf16 matmul, f32 accumulate.
    h = jnp.dot(x, w1_ref[...], preferred_element_type=jnp.float32) + b1_ref[...]
    h = jnp.maximum(h, 0.0)

    # Layer 2
    h = jnp.dot(h.astype(jnp.bfloat16), w2_ref[...],
                preferred_element_type=jnp.float32) + b2_ref[...]
    h = jnp.maximum(h, 0.0)

    # Layer 3
    h = jnp.dot(h.astype(jnp.bfloat16), w3_ref[...],
                preferred_element_type=jnp.float32) + b3_ref[...]
    h = jnp.maximum(h, 0.0)

    # Layer 4 (no activation)
    o_ref[...] = (jnp.dot(h.astype(jnp.bfloat16), w4_ref[...],
                          preferred_element_type=jnp.float32)
                  + b4_ref[...]).astype(o_ref.dtype)


# --------------------------------------------------------------------------
# Wrapper
# --------------------------------------------------------------------------
@functools.partial(jax.jit, static_argnames=("tile_m",))
def decoder_forward(r, x, params, *, tile_m=2048):
    """r: (1, 256), x: (N, 2*eigen_m_size + 4) -> (N, 4) float32."""
    (w1x, w1r, b1, w2, b2, w3, b3, w4, b4) = params
    n, dx = x.shape

    # Hoist the loop-invariant term:  b1' = r @ W1r + b1   (f32, exact).
    b1_eff = jnp.dot(r.astype(jnp.float32), w1r.astype(jnp.float32)) + b1   # (1, 128)

    # bf16 operands for the MXU; biases stay f32 (added after f32 accumulate).
    xb = x.astype(jnp.bfloat16)
    w1b = w1x.astype(jnp.bfloat16)
    w2b = w2.astype(jnp.bfloat16)
    w3b = w3.astype(jnp.bfloat16)
    w4b = w4.astype(jnp.bfloat16)

    # Row tiling: large tiles for pipelining; pad N so the grid divides evenly.
    tile = min(tile_m, n)
    n_pad = pl.cdiv(n, tile) * tile
    if n_pad != n:
        xb = jnp.pad(xb, ((0, n_pad - n), (0, 0)))
    grid = (n_pad // tile,)

    # Advisory cost estimate for XLA's scheduler.
    flops = 2 * n_pad * (dx * 128 + 128 * 64 + 64 * 32 + 32 * 4)
    weight_bytes = 2 * (dx * 128 + 128 * 64 + 64 * 32 + 32 * 4) \
        + 4 * (128 + 64 + 32 + 4)
    bytes_accessed = n_pad * dx * 2 + n_pad * 4 * 4 + weight_bytes

    const = lambda i: (0, 0)          # weights/biases resident across the grid
    out = pl.pallas_call(
        decoder_kernel,
        out_shape=jax.ShapeDtypeStruct((n_pad, 4), jnp.float32),
        grid=grid,
        in_specs=[
            pl.BlockSpec((tile, dx), lambda i: (i, 0)),   # x tile (pipelined)
            pl.BlockSpec((dx, 128), const),               # W1x
            pl.BlockSpec((1, 128), const),                # b1' (r-term folded in)
            pl.BlockSpec((128, 64), const),               # W2
            pl.BlockSpec((1, 64), const),                 # b2
            pl.BlockSpec((64, 32), const),                # W3
            pl.BlockSpec((1, 32), const),                 # b3
            pl.BlockSpec((32, 4), const),                 # W4
            pl.BlockSpec((1, 4), const),                  # b4
        ],
        out_specs=pl.BlockSpec((tile, 4), lambda i: (i, 0)),
        compiler_params=pltpu.CompilerParams(
            dimension_semantics=("parallel",),            # megacore on v7x
        ),
        cost_estimate=pl.CostEstimate(
            flops=int(flops), bytes_accessed=int(bytes_accessed),
            transcendentals=0),
    )(xb, w1b, b1_eff, w2b, b2, w3b, b3, w4b, b4)

    return out[:n] if n_pad != n else out


# --------------------------------------------------------------------------
# Parameter init (mimics nn.Linear default: uniform +/- 1/sqrt(fan_in)).
# Weights stored transposed w.r.t. PyTorch: (in_features, out_features).
# Layer-1 weight split along its input axis into x-part / r-part.
# --------------------------------------------------------------------------
def init_params(key, eigen_m_size):
    dx = 2 * eigen_m_size + 4
    din1 = 256 + dx
    dims = [(din1, 128), (128, 64), (64, 32), (32, 4)]
    keys = jax.random.split(key, 2 * len(dims))
    ws, bs = [], []
    for i, (fi, fo) in enumerate(dims):
        bound = 1.0 / np.sqrt(fi)
        ws.append(jax.random.uniform(keys[2 * i], (fi, fo), jnp.float32, -bound, bound))
        bs.append(jax.random.uniform(keys[2 * i + 1], (1, fo), jnp.float32, -bound, bound))
    w1x = ws[0][:dx, :]     # (Dx, 128)
    w1r = ws[0][dx:, :]     # (256, 128)
    return (w1x, w1r, bs[0], ws[1], bs[1], ws[2], bs[2], ws[3], bs[3])


# --------------------------------------------------------------------------
# References
# --------------------------------------------------------------------------
def decoder_reference_f32(r, x, params):
    """Exact f32 mirror of the PyTorch forward (concat + 4-layer MLP)."""
    (w1x, w1r, b1, w2, b2, w3, b3, w4, b4) = params
    n = x.shape[0]
    xc = jnp.concatenate([x, jnp.broadcast_to(r, (n, r.shape[1]))], axis=1)
    w1 = jnp.concatenate([w1x, w1r], axis=0)
    h = jnp.maximum(xc @ w1 + b1, 0.0)
    h = jnp.maximum(h @ w2 + b2, 0.0)
    h = jnp.maximum(h @ w3 + b3, 0.0)
    return h @ w4 + b4


def decoder_reference_bf16(r, x, params):
    """Pure-JAX reference mirroring the kernel's bf16/f32 mixed precision."""
    (w1x, w1r, b1, w2, b2, w3, b3, w4, b4) = params
    b1_eff = r @ w1r + b1
    h = jnp.dot(x.astype(jnp.bfloat16), w1x.astype(jnp.bfloat16),
                preferred_element_type=jnp.float32) + b1_eff
    h = jnp.maximum(h, 0.0)
    h = jnp.dot(h.astype(jnp.bfloat16), w2.astype(jnp.bfloat16),
                preferred_element_type=jnp.float32) + b2
    h = jnp.maximum(h, 0.0)
    h = jnp.dot(h.astype(jnp.bfloat16), w3.astype(jnp.bfloat16),
                preferred_element_type=jnp.float32) + b3
    h = jnp.maximum(h, 0.0)
    return jnp.dot(h.astype(jnp.bfloat16), w4.astype(jnp.bfloat16),
                   preferred_element_type=jnp.float32) + b4


if __name__ == "__main__":
    eigen_m_size = 8          # -> x feature dim = 2*8 + 4 = 20

    key = jax.random.PRNGKey(0)
    k_p, k_x1, k_x2, k_r = jax.random.split(key, 4)
    params = init_params(k_p, eigen_m_size)
    r = jax.random.normal(k_r, (1, 256), jnp.float32)

    # Case 1: small, odd N (single full-array block).
    x_small = jax.random.normal(k_x1, (37, 2 * eigen_m_size + 4), jnp.float32)
    # Case 2: larger N that exercises the row grid + tail padding.
    x_big = jax.random.normal(k_x2, (3000, 2 * eigen_m_size + 4), jnp.float32)

    for x in (x_small, x_big):
        out = jax.block_until_ready(decoder_forward(r, x, params))

        # Tight check vs a reference that mirrors the kernel's precision.
        ref_bf16 = decoder_reference_bf16(r, x, params)
        np.testing.assert_allclose(np.asarray(out), np.asarray(ref_bf16),
                                   rtol=1e-3, atol=1e-3)
        # Loose sanity check vs the exact f32 PyTorch semantics.
        ref_f32 = decoder_reference_f32(r, x, params)
        np.testing.assert_allclose(np.asarray(out), np.asarray(ref_f32),
                                   rtol=1e-1, atol=1e-1)

    print("KERNEL_OK")
</pallas_src>

<mosaic_0001>
module attributes {stable_mosaic.version = 11 : i64} {
  func.func @decoder_kernel(%arg0: i32, %arg1: memref<37x20xbf16, #tpu.memory_space<vmem>>, %arg2: memref<20x128xbf16, #tpu.memory_space<vmem>>, %arg3: memref<1x128xf32, #tpu.memory_space<vmem>>, %arg4: memref<128x64xbf16, #tpu.memory_space<vmem>>, %arg5: memref<1x64xf32, #tpu.memory_space<vmem>>, %arg6: memref<64x32xbf16, #tpu.memory_space<vmem>>, %arg7: memref<1x32xf32, #tpu.memory_space<vmem>>, %arg8: memref<32x4xbf16, #tpu.memory_space<vmem>>, %arg9: memref<1x4xf32, #tpu.memory_space<vmem>>, %arg10: memref<37x4xf32, #tpu.memory_space<vmem>>) attributes {dimension_semantics = [#tpu.dimension_semantics<parallel>], iteration_bounds = array<i64: 1>, scalar_prefetch = 0 : i64, scratch_operands = 0 : i64, tpu.core_type = #tpu.core_type<tc>, window_params = [{transform_indices = @transform_0, window_bounds = array<i64: 37, 20>}, {pipeline_mode = #tpu.pipeline_mode<synchronous>, transform_indices = @transform_1, window_bounds = array<i64: 20, 128>}, {pipeline_mode = #tpu.pipeline_mode<synchronous>, transform_indices = @transform_2, window_bounds = array<i64: 1, 128>}, {pipeline_mode = #tpu.pipeline_mode<synchronous>, transform_indices = @transform_3, window_bounds = array<i64: 128, 64>}, {pipeline_mode = #tpu.pipeline_mode<synchronous>, transform_indices = @transform_4, window_bounds = array<i64: 1, 64>}, {pipeline_mode = #tpu.pipeline_mode<synchronous>, transform_indices = @transform_5, window_bounds = array<i64: 64, 32>}, {pipeline_mode = #tpu.pipeline_mode<synchronous>, transform_indices = @transform_6, window_bounds = array<i64: 1, 32>}, {pipeline_mode = #tpu.pipeline_mode<synchronous>, transform_indices = @transform_7, window_bounds = array<i64: 32, 4>}, {pipeline_mode = #tpu.pipeline_mode<synchronous>, transform_indices = @transform_8, window_bounds = array<i64: 1, 4>}, {transform_indices = @transform_9, window_bounds = array<i64: 37, 4>}]} {
    %c0 = arith.constant 0 : index
    %c0_0 = arith.constant 0 : index
    %0 = vector.load %arg1[%c0, %c0_0] : memref<37x20xbf16, #tpu.memory_space<vmem>>, vector<37x20xbf16>
    %c0_1 = arith.constant 0 : index
    %c0_2 = arith.constant 0 : index
    %1 = vector.load %arg2[%c0_1, %c0_2] : memref<20x128xbf16, #tpu.memory_space<vmem>>, vector<20x128xbf16>
    %cst = arith.constant dense<0.000000e+00> : vector<37x128xf32>
    %2 = tpu.matmul %0, %1, %cst {dimension_numbers = #tpu.dot_dimension_numbers<[1], [0], [0], [1], [0, 0, 1, 1], [], []>} : vector<37x20xbf16>, vector<20x128xbf16>, vector<37x128xf32> -> vector<37x128xf32>
    %c0_3 = arith.constant 0 : index
    %c0_4 = arith.constant 0 : index
    %3 = vector.load %arg3[%c0_3, %c0_4] : memref<1x128xf32, #tpu.memory_space<vmem>>, vector<1x128xf32>
    %4 = vector.broadcast %3 : vector<1x128xf32> to vector<37x128xf32>
    %5 = arith.addf %2, %4 : vector<37x128xf32>
    %cst_5 = arith.constant 0.000000e+00 : f32
    %6 = vector.broadcast %cst_5 : f32 to vector<37x128xf32>
    %7 = arith.maximumf %5, %6 : vector<37x128xf32>
    %8 = arith.truncf %7 : vector<37x128xf32> to vector<37x128xbf16>
    %c0_6 = arith.constant 0 : index
    %c0_7 = arith.constant 0 : index
    %9 = vector.load %arg4[%c0_6, %c0_7] : memref<128x64xbf16, #tpu.memory_space<vmem>>, vector<128x64xbf16>
    %cst_8 = arith.constant dense<0.000000e+00> : vector<37x64xf32>
    %10 = tpu.matmul %8, %9, %cst_8 {dimension_numbers = #tpu.dot_dimension_numbers<[1], [0], [0], [1], [0, 0, 1, 1], [], []>} : vector<37x128xbf16>, vector<128x64xbf16>, vector<37x64xf32> -> vector<37x64xf32>
    %c0_9 = arith.constant 0 : index
    %c0_10 = arith.constant 0 : index
    %11 = vector.load %arg5[%c0_9, %c0_10] : memref<1x64xf32, #tpu.memory_space<vmem>>, vector<1x64xf32>
    %12 = vector.broadcast %11 : vector<1x64xf32> to vector<37x64xf32>
    %13 = arith.addf %10, %12 : vector<37x64xf32>
    %cst_11 = arith.constant 0.000000e+00 : f32
    %14 = vector.broadcast %cst_11 : f32 to vector<37x64xf32>
    %15 = arith.maximumf %13, %14 : vector<37x64xf32>
    %16 = arith.truncf %15 : vector<37x64xf32> to vector<37x64xbf16>
    %c0_12 = arith.constant 0 : index
    %c0_13 = arith.constant 0 : index
    %17 = vector.load %arg6[%c0_12, %c0_13] : memref<64x32xbf16, #tpu.memory_space<vmem>>, vector<64x32xbf16>
    %cst_14 = arith.constant dense<0.000000e+00> : vector<37x32xf32>
    %18 = tpu.matmul %16, %17, %cst_14 {dimension_numbers = #tpu.dot_dimension_numbers<[1], [0], [0], [1], [0, 0, 1, 1], [], []>} : vector<37x64xbf16>, vector<64x32xbf16>, vector<37x32xf32> -> vector<37x32xf32>
    %c0_15 = arith.constant 0 : index
    %c0_16 = arith.constant 0 : index
    %19 = vector.load %arg7[%c0_15, %c0_16] : memref<1x32xf32, #tpu.memory_space<vmem>>, vector<1x32xf32>
    %20 = vector.broadcast %19 : vector<1x32xf32> to vector<37x32xf32>
    %21 = arith.addf %18, %20 : vector<37x32xf32>
    %cst_17 = arith.constant 0.000000e+00 : f32
    %22 = vector.broadcast %cst_17 : f32 to vector<37x32xf32>
    %23 = arith.maximumf %21, %22 : vector<37x32xf32>
    %24 = arith.truncf %23 : vector<37x32xf32> to vector<37x32xbf16>
    %c0_18 = arith.constant 0 : index
    %c0_19 = arith.constant 0 : index
    %25 = vector.load %arg8[%c0_18, %c0_19] : memref<32x4xbf16, #tpu.memory_space<vmem>>, vector<32x4xbf16>
    %cst_20 = arith.constant dense<0.000000e+00> : vector<37x4xf32>
    %26 = tpu.matmul %24, %25, %cst_20 {dimension_numbers = #tpu.dot_dimension_numbers<[1], [0], [0], [1], [0, 0, 1, 1], [], []>} : vector<37x32xbf16>, vector<32x4xbf16>, vector<37x4xf32> -> vector<37x4xf32>
    %c0_21 = arith.constant 0 : index
    %c0_22 = arith.constant 0 : index
    %27 = vector.load %arg9[%c0_21, %c0_22] : memref<1x4xf32, #tpu.memory_space<vmem>>, vector<1x4xf32>
    %28 = vector.broadcast %27 : vector<1x4xf32> to vector<37x4xf32>
    %29 = arith.addf %26, %28 : vector<37x4xf32>
    %c0_23 = arith.constant 0 : index
    %c0_24 = arith.constant 0 : index
    %30 = vector.load %arg10[%c0_23, %c0_24] : memref<37x4xf32, #tpu.memory_space<vmem>>, vector<37x4xf32>
    tpu.vector_store %arg10[%c0_23, %c0_24], %29 {strides = array<i32>} : memref<37x4xf32, #tpu.memory_space<vmem>>, vector<37x4xf32>,
    return
  }
  func.func @transform_0(%arg0: i32) -> (i32, i32) {
    %c0_i32 = arith.constant 0 : i32
    %c0_i32_0 = arith.constant 0 : i32
    return %arg0, %c0_i32 : i32, i32
  }
  func.func @transform_1(%arg0: i32) -> (i32, i32) {
    %c0_i32 = arith.constant 0 : i32
    %c0_i32_0 = arith.constant 0 : i32
    %c0_i32_1 = arith.constant 0 : i32
    return %c0_i32, %c0_i32_0 : i32, i32
  }
  func.func @transform_2(%arg0: i32) -> (i32, i32) {
    %c0_i32 = arith.constant 0 : i32
    %c0_i32_0 = arith.constant 0 : i32
    %c0_i32_1 = arith.constant 0 : i32
    return %c0_i32, %c0_i32_0 : i32, i32
  }
  func.func @transform_3(%arg0: i32) -> (i32, i32) {
    %c0_i32 = arith.constant 0 : i32
    %c0_i32_0 = arith.constant 0 : i32
    %c0_i32_1 = arith.constant 0 : i32
    return %c0_i32, %c0_i32_0 : i32, i32
  }
  func.func @transform_4(%arg0: i32) -> (i32, i32) {
    %c0_i32 = arith.constant 0 : i32
    %c0_i32_0 = arith.constant 0 : i32
    %c0_i32_1 = arith.constant 0 : i32
    return %c0_i32, %c0_i32_0 : i32, i32
  }
  func.func @transform_5(%arg0: i32) -> (i32, i32) {
    %c0_i32 = arith.constant 0 : i32
    %c0_i32_0 = arith.constant 0 : i32
    %c0_i32_1 = arith.constant 0 : i32
    return %c0_i32, %c0_i32_0 : i32, i32
  }
  func.func @transform_6(%arg0: i32) -> (i32, i32) {
    %c0_i32 = arith.constant 0 : i32
    %c0_i32_0 = arith.constant 0 : i32
    %c0_i32_1 = arith.constant 0 : i32
    return %c0_i32, %c0_i32_0 : i32, i32
  }
  func.func @transform_7(%arg0: i32) -> (i32, i32) {
    %c0_i32 = arith.constant 0 : i32
    %c0_i32_0 = arith.constant 0 : i32
    %c0_i32_1 = arith.constant 0 : i32
    return %c0_i32, %c0_i32_0 : i32, i32
  }
  func.func @transform_8(%arg0: i32) -> (i32, i32) {
    %c0_i32 = arith.constant 0 : i32
    %c0_i32_0 = arith.constant 0 : i32
    %c0_i32_1 = arith.constant 0 : i32
    return %c0_i32, %c0_i32_0 : i32, i32
  }
  func.func @transform_9(%arg0: i32) -> (i32, i32) {
    %c0_i32 = arith.constant 0 : i32
    %c0_i32_0 = arith.constant 0 : i32
    return %arg0, %c0_i32 : i32, i32
  }
}

</mosaic_0001>

<llo_original>
// kernel: decoder_forward.1
$region0: #{decoder_forward.1}
  #allocation0 [shape = 'u32[]', space=smem, size = 0x4, offset = 0x4, fixed_abs, tag = 'smem constant byte address 0x4 - core index']
  #allocation1 [shape = 'u32[144,128]{1,0:T(1,128)}', space=vmem, size = 0x12000, scoped, tag = 'internal scratch']
  %s0 = inlined_call_operand.vmem [shape: bf16[37,20], index: 0, kind: input, shape index: {}]
  %s1 = inlined_call_operand.vmem [shape: bf16[20,128], index: 1, kind: input, shape index: {}]
  %s2 = inlined_call_operand.vmem [shape: f32[1,128], index: 2, kind: input, shape index: {}]
  %s3 = inlined_call_operand.vmem [shape: bf16[128,64], index: 3, kind: input, shape index: {}]
  %s4 = inlined_call_operand.vmem [shape: f32[1,64], index: 4, kind: input, shape index: {}]
  %s5 = inlined_call_operand.vmem [shape: bf16[64,32], index: 5, kind: input, shape index: {}]
  %s6 = inlined_call_operand.vmem [shape: f32[1,32], index: 6, kind: input, shape index: {}]
  %s7 = inlined_call_operand.vmem [shape: bf16[32,4], index: 7, kind: input, shape index: {}]
  %s8 = inlined_call_operand.vmem [shape: f32[1,4], index: 8, kind: input, shape index: {}]
  %s9 = inlined_call_operand.vmem [shape: f32[37,4], index: 9, kind: output, shape index: {}]
  %s10 = sld [smem:[#allocation0]]
  $region46: #{decoder_forward.1} parent=0
    _
  %s12 = ssub.s32 1, %s10
  %s13 = scalar_select 0, %s12, %s10
  // Predicated region
  $region2: #{decoder_forward.1} parent=0 // pred_check
    _
  $region3: #{decoder_forward.1} parent=0 // pred_check_branch
    %15 = sbr.rel (0) target = $region5
  $region4: #{decoder_forward.1} parent=0 // pred_region
    _
  $region5: #{decoder_forward.1} parent=0 // pred_fallthru
    _
  // Predicated region
  $region6: #{decoder_forward.1} parent=0 // pred_check
    _
  $region7: #{decoder_forward.1} parent=0 // pred_check_branch
    %17 = sbr.rel (0) target = $region9
  $region8: #{decoder_forward.1} parent=0 // pred_region
    _
  $region9: #{decoder_forward.1} parent=0 // pred_fallthru
    _
  // Predicated region
  $region10: #{decoder_forward.1} parent=0 // pred_check
    _
  $region11: #{decoder_forward.1} parent=0 // pred_check_branch
    %19 = sbr.rel (0) target = $region13
  $region12: #{decoder_forward.1} parent=0 // pred_region
    _
  $region13: #{decoder_forward.1} parent=0 // pred_fallthru
    _
  // Predicated region
  $region14: #{decoder_forward.1} parent=0 // pred_check
    _
  $region15: #{decoder_forward.1} parent=0 // pred_check_branch
    %21 = sbr.rel (0) target = $region17
  $region16: #{decoder_forward.1} parent=0 // pred_region
    _
  $region17: #{decoder_forward.1} parent=0 // pred_fallthru
    _
  // Predicated region
  $region18: #{decoder_forward.1} parent=0 // pred_check
    _
  $region19: #{decoder_forward.1} parent=0 // pred_check_branch
    %23 = sbr.rel (0) target = $region21
  $region20: #{decoder_forward.1} parent=0 // pred_region
    _
  $region21: #{decoder_forward.1} parent=0 // pred_fallthru
    _
  // Predicated region
  $region22: #{decoder_forward.1} parent=0 // pred_check
    _
  $region23: #{decoder_forward.1} parent=0 // pred_check_branch
    %25 = sbr.rel (0) target = $region25
  $region24: #{decoder_forward.1} parent=0 // pred_region
    _
  $region25: #{decoder_forward.1} parent=0 // pred_fallthru
    _
  // Predicated region
  $region26: #{decoder_forward.1} parent=0 // pred_check
    _
  $region27: #{decoder_forward.1} parent=0 // pred_check_branch
    %27 = sbr.rel (0) target = $region29
  $region28: #{decoder_forward.1} parent=0 // pred_region
    _
  $region29: #{decoder_forward.1} parent=0 // pred_fallthru
    _
  // Predicated region
  $region30: #{decoder_forward.1} parent=0 // pred_check
    _
  $region31: #{decoder_forward.1} parent=0 // pred_check_branch
    %29 = sbr.rel (0) target = $region33
  $region32: #{decoder_forward.1} parent=0 // pred_region
    _
  $region33: #{decoder_forward.1} parent=0 // pred_fallthru
    _
  // Predicated region
  $region34: #{decoder_forward.1} parent=0 // pred_check
    _
  $region35: #{decoder_forward.1} parent=0 // pred_check_branch
    %31 = sbr.rel (0) target = $region37
  $region36: #{decoder_forward.1} parent=0 // pred_region
    _
  $region37: #{decoder_forward.1} parent=0 // pred_fallthru
    _
  %v33 = vld [vmem:[%s0] sm:$0xf]
  %v34 = vld [vmem:[%s0 + $0x4] sm:$0xf]
  %v35 = vld [vmem:[%s0 + $0x8] sm:$0xf]
  %v36 = vld [vmem:[%s0 + $0xc] sm:$0xf]
  %v37 = vld [vmem:[%s0 + $0x10] sm:$0x7]
  %v38 = vld [vmem:[%s1] sm:$0xf]
  %v39 = vld [vmem:[%s1 + $0x4] sm:$0xf]
  %v40 = vld [vmem:[%s1 + $0x8] sm:$0x3]
  %v41 = vld [vmem:[%s2] sm:$0x1]
  %v43 = vlaneseq
  %v44 = vshrl.u32 %v43, 7
  %v45 = vsub.s32 0, %v44
  %v46 = vrot.slane %v41, %v45
  %v53 = vunpack.c.l.b16 %v33
  %v54 = vunpack.c.l.b16 %v34
  %v55 = vunpack.c.l.b16 %v35
  %v56 = vunpack.c.l.b16 %v36
  %v57 = vunpack.c.l.b16 %v37
  %v58 = vpack.c.b16 %v54, %v53
  %v59 = vpack.c.b16 %v56, %v55
  %v60 = vpack.c.b16 %v57, %v57
  %v64 = vunpack.c.l.b16 %v38
  %v65 = vunpack.c.l.b16 %v39
  %v66 = vunpack.c.l.b16 %v40
  %v67 = vpack.c.b16 %v65, %v64
  %v68 = vpack.c.b16 %v66, %v66
  %vm70 = vcmask 162816
  %v72 = vsel %vm70, %v58, 0
  %v75 = vsel %vm70, %v59, 0
  %v78 = vsel %vm70, %v60, 0
  %vm80 = vcmask 1041408
  %v82 = vsel %vm80, %v68, 0
  %84 = vmatprep.subr.bf16.mxu0 0
  %85 = vmatpush1.bf16.msra.mxu0 %v67
  %86 = vmatprep.subr.bf16.mxu0 0
  %87 = vmatpush1.bf16.msra.mxu0 %v82
  %88 = vmatprep.subr.bf16.mxu0 0
  %89 = vmatpush1.bf16.msra.mxu0 0
  %90 = vmatprep.subr.bf16.mxu0 0
  %91 = vmatpush1.bf16.msra.mxu0 0
  %92 = vmatprep.subr.bf16.mxu0 0
  %93 = vmatpush1.bf16.msra.mxu0 0
  %94 = vmatprep.subr.bf16.mxu0 0
  %95 = vmatpush1.bf16.msra.mxu0 0
  %96 = vmatprep.subr.bf16.mxu0 0
  %97 = vmatpush1.bf16.msra.mxu0 0
  %98 = vmatprep.subr.bf16.mxu0 0
  %99 = vmatpush1.bf16.msra.mxu0 0
  %100 = vmatprep.subr.bf16.mxu0 0
  %101 = vmatpush1.bf16.msra.mxu0 0
  %102 = vmatprep.subr.bf16.mxu0 0
  %103 = vmatpush1.bf16.msra.mxu0 0
  %104 = vmatprep.subr.bf16.mxu0 0
  %105 = vmatpush1.bf16.msra.mxu0 0
  %106 = vmatprep.subr.bf16.mxu0 0
  %107 = vmatpush1.bf16.msra.mxu0 0
  %108 = vmatprep.subr.bf16.mxu0 0
  %109 = vmatpush1.bf16.msra.mxu0 0
  %110 = vmatprep.subr.bf16.mxu0 0
  %111 = vmatpush1.bf16.msra.mxu0 0
  %112 = vmatprep.subr.bf16.mxu0 0
  %113 = vmatpush1.bf16.msra.mxu0 0
  %114 = vmatprep.subr.bf16.mxu0 0
  %115 = vmatpush1.bf16.msra.mxu0 0
  %116 = vmatprep.mubr.bf16.mxu0 0
  %117 = vmatmul.mubr.bf16.gmra.mrb[0].mxu0 %v72
  %v118 = vpop.f32.mrb[0].mxu0
  %v119 = vadd.f32 %v46, %v118
  %v120 = vpop.f32.mrb[0].mxu0
  %v121 = vpop.f32.mrb[0].mxu0
  %v122 = vadd.f32 %v46, %v121
  %v123 = vpop.f32.mrb[0].mxu0
  %124 = vmatprep.mubr.bf16.mxu0 0
  %125 = vmatmul.mubr.bf16.gmra.mrb[0].mxu0 %v75
  %v126 = vpop.f32.mrb[0].mxu0
  %v127 = vadd.f32 %v46, %v126
  %v128 = vpop.f32.mrb[0].mxu0
  %v129 = vpop.f32.mrb[0].mxu0
  %v130 = vadd.f32 %v46, %v129
  %v131 = vpop.f32.mrb[0].mxu0
  %132 = vmatprep.mubr.bf16.mxu0 0
  %133 = vmatmul.mubr.bf16.gmra.mrb[0].mxu0 %v78
  %v134 = vpop.f32.mrb[0].mxu0
  %v135 = vadd.f32 %v46, %v134
  %v136 = vpop.f32.mrb[0].mxu0
  %v137 = vpop.f32.mrb[0].mxu0
  %v138 = vpop.f32.mrb[0].mxu0
  %139 = vdwg.mxu0
  %v140 = vmax.f32 %v119, 0.0
  %v141 = vmax.f32 %v122, 0.0
  %v142 = vmax.f32 %v127, 0.0
  %v143 = vmax.f32 %v130, 0.0
  %v144 = vmax.f32 %v135, 0.0
  %v145 = vpack.c.bf16 %v141, %v140
  %v146 = vpack.c.bf16 %v143, %v142
  %v147 = vpack.c.bf16 %v144, %v144
  %v148 = vld [vmem:[%s3] sm:$0xf]
  %v149 = vld [vmem:[%s3 + $0x4] sm:$0xf]
  %v150 = vld [vmem:[%s3 + $0x8] sm:$0xf]
  %v151 = vld [vmem:[%s3 + $0xc] sm:$0xf]
  %v152 = vld [vmem:[%s3 + $0x10] sm:$0xf]
  %v153 = vld [vmem:[%s3 + $0x14] sm:$0xf]
  %v154 = vld [vmem:[%s3 + $0x18] sm:$0xf]
  %v155 = vld [vmem:[%s3 + $0x1c] sm:$0xf]
  %v156 = vld [vmem:[%s3 + $0x20] sm:$0xf]
  %v157 = vld [vmem:[%s3 + $0x24] sm:$0xf]
  %v158 = vld [vmem:[%s3 + $0x28] sm:$0xf]
  %v159 = vld [vmem:[%s3 + $0x2c] sm:$0xf]
  %v160 = vld [vmem:[%s3 + $0x30] sm:$0xf]
  %v161 = vld [vmem:[%s3 + $0x34] sm:$0xf]
  %v162 = vld [vmem:[%s3 + $0x38] sm:$0xf]
  %v163 = vld [vmem:[%s3 + $0x3c] sm:$0xf]
  %v164 = vld [vmem:[%s4] sm:$0x1]
  %v166 = vlaneseq
  %v167 = vshrl.u32 %v166, 7
  %v168 = vsub.s32 0, %v167
  %v169 = vrot.slane %v164, %v168
  %v187 = vunpack.c.l.b16 %v148
  %v188 = vunpack.c.l.b16 %v149
  %v189 = vunpack.c.l.b16 %v150
  %v190 = vunpack.c.l.b16 %v151
  %v191 = vunpack.c.l.b16 %v152
  %v192 = vunpack.c.l.b16 %v153
  %v193 = vunpack.c.l.b16 %v154
  %v194 = vunpack.c.l.b16 %v155
  %v195 = vunpack.c.l.b16 %v156
  %v196 = vunpack.c.l.b16 %v157
  %v197 = vunpack.c.l.b16 %v158
  %v198 = vunpack.c.l.b16 %v159
  %v199 = vunpack.c.l.b16 %v160
  %v200 = vunpack.c.l.b16 %v161
  %v201 = vunpack.c.l.b16 %v162
  %v202 = vunpack.c.l.b16 %v163
  %v203 = vpack.c.b16 %v188, %v187
  %v204 = vpack.c.b16 %v190, %v189
  %v205 = vpack.c.b16 %v192, %v191
  %v206 = vpack.c.b16 %v194, %v193
  %v207 = vpack.c.b16 %v196, %v195
  %v208 = vpack.c.b16 %v198, %v197
  %v209 = vpack.c.b16 %v200, %v199
  %v210 = vpack.c.b16 %v202, %v201
  %219 = vmatprep.subr.bf16.mxu0 0
  %220 = vmatpush1.bf16.msra.mxu0 %v203
  %221 = vmatprep.subr.bf16.mxu0 0
  %222 = vmatpush1.bf16.msra.mxu0 %v204
  %223 = vmatprep.subr.bf16.mxu0 0
  %224 = vmatpush1.bf16.msra.mxu0 %v205
  %225 = vmatprep.subr.bf16.mxu0 0
  %226 = vmatpush1.bf16.msra.mxu0 %v206
  %227 = vmatprep.subr.bf16.mxu0 0
  %228 = vmatpush1.bf16.msra.mxu0 %v207
  %229 = vmatprep.subr.bf16.mxu0 0
  %230 = vmatpush1.bf16.msra.mxu0 %v208
  %231 = vmatprep.subr.bf16.mxu0 0
  %232 = vmatpush1.bf16.msra.mxu0 %v209
  %233 = vmatprep.subr.bf16.mxu0 0
  %234 = vmatpush1.bf16.msra.mxu0 %v210
  %235 = vmatprep.subr.bf16.mxu0 0
  %236 = vmatpush1.bf16.msra.mxu0 0
  %237 = vmatprep.subr.bf16.mxu0 0
  %238 = vmatpush1.bf16.msra.mxu0 0
  %239 = vmatprep.subr.bf16.mxu0 0
  %240 = vmatpush1.bf16.msra.mxu0 0
  %241 = vmatprep.subr.bf16.mxu0 0
  %242 = vmatpush1.bf16.msra.mxu0 0
  %243 = vmatprep.subr.bf16.mxu0 0
  %244 = vmatpush1.bf16.msra.mxu0 0
  %245 = vmatprep.subr.bf16.mxu0 0
  %246 = vmatpush1.bf16.msra.mxu0 0
  %247 = vmatprep.subr.bf16.mxu0 0
  %248 = vmatpush1.bf16.msra.mxu0 0
  %249 = vmatprep.subr.bf16.mxu0 0
  %250 = vmatpush1.bf16.msra.mxu0 0
  %251 = vmatprep.mubr.bf16.mxu0 0
  %252 = vmatmul.mubr.bf16.gmra.mrb[0].mxu0 %v145
  %v253 = vpop.f32.mrb[0].mxu0
  %v254 = vadd.f32 %v169, %v253
  %v255 = vpop.f32.mrb[0].mxu0
  %v256 = vpop.f32.mrb[0].mxu0
  %v257 = vadd.f32 %v169, %v256
  %v258 = vpop.f32.mrb[0].mxu0
  %259 = vmatprep.mubr.bf16.mxu0 0
  %260 = vmatmul.mubr.bf16.gmra.mrb[0].mxu0 %v146
  %v261 = vpop.f32.mrb[0].mxu0
  %v262 = vadd.f32 %v169, %v261
  %v263 = vpop.f32.mrb[0].mxu0
  %v264 = vpop.f32.mrb[0].mxu0
  %v265 = vadd.f32 %v169, %v264
  %v266 = vpop.f32.mrb[0].mxu0
  %267 = vmatprep.mubr.bf16.mxu0 0
  %268 = vmatmul.mubr.bf16.gmra.mrb[0].mxu0 %v147
  %v269 = vpop.f32.mrb[0].mxu0
  %v270 = vadd.f32 %v169, %v269
  %v271 = vpop.f32.mrb[0].mxu0
  %v272 = vpop.f32.mrb[0].mxu0
  %v273 = vpop.f32.mrb[0].mxu0
  %274 = vdwg.mxu0
  %v275 = vmax.f32 %v254, 0.0
  %v276 = vmax.f32 %v257, 0.0
  %v277 = vmax.f32 %v262, 0.0
  %v278 = vmax.f32 %v265, 0.0
  %v279 = vmax.f32 %v270, 0.0
  %v280 = vpack.c.bf16 %v276, %v275
  %v281 = vpack.c.bf16 %v278, %v277
  %v282 = vpack.c.bf16 %v279, %v279
  %v283 = vld [vmem:[%s5] sm:$0xf]
  %v284 = vld [vmem:[%s5 + $0x4] sm:$0xf]
  %v285 = vld [vmem:[%s5 + $0x8] sm:$0xf]
  %v286 = vld [vmem:[%s5 + $0xc] sm:$0xf]
  %v287 = vld [vmem:[%s5 + $0x10] sm:$0xf]
  %v288 = vld [vmem:[%s5 + $0x14] sm:$0xf]
  %v289 = vld [vmem:[%s5 + $0x18] sm:$0xf]
  %v290 = vld [vmem:[%s5 + $0x1c] sm:$0xf]
  %v291 = vld [vmem:[%s6] sm:$0x1]
  %v293 = vlaneseq
  %v294 = vshrl.u32 %v293, 7
  %v295 = vsub.s32 0, %v294
  %v296 = vrot.slane %v291, %v295
  %v306 = vunpack.c.l.b16 %v283
  %v307 = vunpack.c.l.b16 %v284
  %v308 = vunpack.c.l.b16 %v285
  %v309 = vunpack.c.l.b16 %v286
  %v310 = vunpack.c.l.b16 %v287
  %v311 = vunpack.c.l.b16 %v288
  %v312 = vunpack.c.l.b16 %v289
  %v313 = vunpack.c.l.b16 %v290
  %v314 = vpack.c.b16 %v307, %v306
  %v315 = vpack.c.b16 %v309, %v308
  %v316 = vpack.c.b16 %v311, %v310
  %v317 = vpack.c.b16 %v313, %v312
  %vm322 = vcmask 523264
  %v324 = vsel %vm322, %v280, 0
  %v327 = vsel %vm322, %v281, 0
  %v330 = vsel %vm322, %v282, 0
  %332 = vmatprep.subr.bf16.mxu0 0
  %333 = vmatpush1.bf16.msra.mxu0 %v314
  %334 = vmatprep.subr.bf16.mxu0 0
  %335 = vmatpush1.bf16.msra.mxu0 %v315
  %336 = vmatprep.subr.bf16.mxu0 0
  %337 = vmatpush1.bf16.msra.mxu0 %v316
  %338 = vmatprep.subr.bf16.mxu0 0
  %339 = vmatpush1.bf16.msra.mxu0 %v317
  %340 = vmatprep.subr.bf16.mxu0 0
  %341 = vmatpush1.bf16.msra.mxu0 0
  %342 = vmatprep.subr.bf16.mxu0 0
  %343 = vmatpush1.bf16.msra.mxu0 0
  %344 = vmatprep.subr.bf16.mxu0 0
  %345 = vmatpush1.bf16.msra.mxu0 0
  %346 = vmatprep.subr.bf16.mxu0 0
  %347 = vmatpush1.bf16.msra.mxu0 0
  %348 = vmatprep.subr.bf16.mxu0 0
  %349 = vmatpush1.bf16.msra.mxu0 0
  %350 = vmatprep.subr.bf16.mxu0 0
  %351 = vmatpush1.bf16.msra.mxu0 0
  %352 = vmatprep.subr.bf16.mxu0 0
  %353 = vmatpush1.bf16.msra.mxu0 0
  %354 = vmatprep.subr.bf16.mxu0 0
  %355 = vmatpush1.bf16.msra.mxu0 0
  %356 = vmatprep.subr.bf16.mxu0 0
  %357 = vmatpush1.bf16.msra.mxu0 0
  %358 = vmatprep.subr.bf16.mxu0 0
  %359 = vmatpush1.bf16.msra.mxu0 0
  %360 = vmatprep.subr.bf16.mxu0 0
  %361 = vmatpush1.bf16.msra.mxu0 0
  %362 = vmatprep.subr.bf16.mxu0 0
  %363 = vmatpush1.bf16.msra.mxu0 0
  %364 = vmatprep.mubr.bf16.mxu0 0
  %365 = vmatmul.mubr.bf16.gmra.mrb[0].mxu0 %v324
  %v366 = vpop.f32.mrb[0].mxu0
  %v367 = vadd.f32 %v296, %v366
  %v368 = vpop.f32.mrb[0].mxu0
  %v369 = vpop.f32.mrb[0].mxu0
  %v370 = vadd.f32 %v296, %v369
  %v371 = vpop.f32.mrb[0].mxu0
  %372 = vmatprep.mubr.bf16.mxu0 0
  %373 = vmatmul.mubr.bf16.gmra.mrb[0].mxu0 %v327
  %v374 = vpop.f32.mrb[0].mxu0
  %v375 = vadd.f32 %v296, %v374
  %v376 = vpop.f32.mrb[0].mxu0
  %v377 = vpop.f32.mrb[0].mxu0
  %v378 = vadd.f32 %v296, %v377
  %v379 = vpop.f32.mrb[0].mxu0
  %380 = vmatprep.mubr.bf16.mxu0 0
  %381 = vmatmul.mubr.bf16.gmra.mrb[0].mxu0 %v330
  %v382 = vpop.f32.mrb[0].mxu0
  %v383 = vadd.f32 %v296, %v382
  %v384 = vpop.f32.mrb[0].mxu0
  %v385 = vpop.f32.mrb[0].mxu0
  %v386 = vpop.f32.mrb[0].mxu0
  %387 = vdwg.mxu0
  %v388 = vmax.f32 %v367, 0.0
  %v389 = vmax.f32 %v370, 0.0
  %v390 = vmax.f32 %v375, 0.0
  %v391 = vmax.f32 %v378, 0.0
  %v392 = vmax.f32 %v383, 0.0
  %v393 = vpack.c.bf16 %v389, %v388
  %v394 = vpack.c.bf16 %v391, %v390
  %v395 = vpack.c.bf16 %v392, %v392
  %v396 = vld [vmem:[%s7] sm:$0xf]
  %v397 = vld [vmem:[%s7 + $0x4] sm:$0xf]
  %v398 = vld [vmem:[%s7 + $0x8] sm:$0xf]
  %v399 = vld [vmem:[%s7 + $0xc] sm:$0xf]
  %v400 = vld [vmem:[%s8] sm:$0x1]
  %v402 = vlaneseq
  %v403 = vshrl.u32 %v402, 7
  %v404 = vsub.s32 0, %v403
  %v405 = vrot.slane %v400, %v404
  %v411 = vunpack.c.l.b16 %v396
  %v412 = vunpack.c.l.b16 %v397
  %v413 = vunpack.c.l.b16 %v398
  %v414 = vunpack.c.l.b16 %v399
  %v415 = vpack.c.b16 %v412, %v411
  %v416 = vpack.c.b16 %v414, %v413
  %vm419 = vcmask 261120
  %v421 = vsel %vm419, %v393, 0
  %v424 = vsel %vm419, %v394, 0
  %v427 = vsel %vm419, %v395, 0
  %429 = vmatprep.subr.bf16.mxu0 0
  %430 = vmatpush1.bf16.msra.mxu0 %v415
  %431 = vmatprep.subr.bf16.mxu0 0
  %432 = vmatpush1.bf16.msra.mxu0 %v416
  %433 = vmatprep.subr.bf16.mxu0 0
  %434 = vmatpush1.bf16.msra.mxu0 0
  %435 = vmatprep.subr.bf16.mxu0 0
  %436 = vmatpush1.bf16.msra.mxu0 0
  %437 = vmatprep.subr.bf16.mxu0 0
  %438 = vmatpush1.bf16.msra.mxu0 0
  %439 = vmatprep.subr.bf16.mxu0 0
  %440 = vmatpush1.bf16.msra.mxu0 0
  %441 = vmatprep.subr.bf16.mxu0 0
  %442 = vmatpush1.bf16.msra.mxu0 0
  %443 = vmatprep.subr.bf16.mxu0 0
  %444 = vmatpush1.bf16.msra.mxu0 0
  %445 = vmatprep.subr.bf16.mxu0 0
  %446 = vmatpush1.bf16.msra.mxu0 0
  %447 = vmatprep.subr.bf16.mxu0 0
  %448 = vmatpush1.bf16.msra.mxu0 0
  %449 = vmatprep.subr.bf16.mxu0 0
  %450 = vmatpush1.bf16.msra.mxu0 0
  %451 = vmatprep.subr.bf16.mxu0 0
  %452 = vmatpush1.bf16.msra.mxu0 0
  %453 = vmatprep.subr.bf16.mxu0 0
  %454 = vmatpush1.bf16.msra.mxu0 0
  %455 = vmatprep.subr.bf16.mxu0 0
  %456 = vmatpush1.bf16.msra.mxu0 0
  %457 = vmatprep.subr.bf16.mxu0 0
  %458 = vmatpush1.bf16.msra.mxu0 0
  %459 = vmatprep.subr.bf16.mxu0 0
  %460 = vmatpush1.bf16.msra.mxu0 0
  %461 = vmatprep.mubr.bf16.mxu0 0
  %462 = vmatmul.mubr.bf16.gmra.mrb[0].mxu0 %v421
  %v463 = vpop.f32.mrb[0].mxu0
  %v464 = vadd.f32 %v405, %v463
  %v465 = vpop.f32.mrb[0].mxu0
  %v466 = vpop.f32.mrb[0].mxu0
  %v467 = vadd.f32 %v405, %v466
  %v468 = vpop.f32.mrb[0].mxu0
  %469 = vmatprep.mubr.bf16.mxu0 0
  %470 = vmatmul.mubr.bf16.gmra.mrb[0].mxu0 %v424
  %v471 = vpop.f32.mrb[0].mxu0
  %v472 = vadd.f32 %v405, %v471
  %v473 = vpop.f32.mrb[0].mxu0
  %v474 = vpop.f32.mrb[0].mxu0
  %v475 = vadd.f32 %v405, %v474
  %v476 = vpop.f32.mrb[0].mxu0
  %477 = vmatprep.mubr.bf16.mxu0 0
  %478 = vmatmul.mubr.bf16.gmra.mrb[0].mxu0 %v427
  %v479 = vpop.f32.mrb[0].mxu0
  %v480 = vadd.f32 %v405, %v479
  %v481 = vpop.f32.mrb[0].mxu0
  %v482 = vpop.f32.mrb[0].mxu0
  %v483 = vpop.f32.mrb[0].mxu0
  %484 = vdwg.mxu0
  %vm485 = vcmask 31744
  %486 = vst.msk [vmem:[%s9] sm:$0xff] %vm485, %v464
  %487 = vst.msk [vmem:[%s9 + $0x8] sm:$0xff] %vm485, %v467
  %488 = vst.msk [vmem:[%s9 + $0x10] sm:$0xff] %vm485, %v472
  %489 = vst.msk [vmem:[%s9 + $0x18] sm:$0xff] %vm485, %v475
  %vm490 = vcmask 28672
  %491 = vst.msk [vmem:[%s9 + $0x20] sm:$0x1f] %vm490, %v480
  // Predicated region
  $region38: #{decoder_forward.1} parent=0 // pred_check
    _
  $region39: #{decoder_forward.1} parent=0 // pred_check_branch
    %493 = sbr.rel (0) target = $region41
  $region40: #{decoder_forward.1} parent=0 // pred_region
    _
  $region41: #{decoder_forward.1} parent=0 // pred_fallthru
    _
  // Predicated region
  $region42: #{decoder_forward.1} parent=0 // pred_check
    _
  $region43: #{decoder_forward.1} parent=0 // pred_check_branch
    %495 = sbr.rel (0) target = $region45
  $region44: #{decoder_forward.1} parent=0 // pred_region
    _
  $region45: #{decoder_forward.1} parent=0 // pred_fallthru
    _

</llo_original>
